<compile_context>
chip_gen: v7x
topology: tpu7x:2x2x1
jax: 0.10.0
libtpu: 0.0.40
codegen_flags: <defaults>
</compile_context>

<pallas_src>
import math

import numpy as np

import jax
import jax.numpy as jnp
from jax.experimental import pallas as pl
from jax.experimental.pallas import tpu as pltpu


# ------------------------------ tiling helpers ------------------------------ #

def _round_up(x: int, m: int) -> int:
    return ((x + m - 1) // m) * m


def _tile_m(M: int):
    """(tm, Mp): M tile and padded M."""
    if M <= 512:
        return M, M                      # single full-dim block (exempt)
    for t in (512, 256, 128):
        if M % t == 0:
            return t, M
    return 256, _round_up(M, 256)


def _tile_k(K: int):
    """(tk, Kp): K tile and padded K."""
    if K <= 1024:
        return K, K                      # untiled K: full-dim block (exempt)
    for t in (1024, 512, 256):
        if K % t == 0:
            return t, K
    return 512, _round_up(K, 512)


def _tile_n(Np: int) -> int:
    """N tile for an already lane-padded width (multiple of 128)."""
    assert Np % 128 == 0
    if Np <= 512:
        return Np
    for t in (512, 256):
        if Np % t == 0:
            return t
    return 128


def _pad_n(N: int) -> int:
    """Pad output width: 128 for small N, else 256-granular (v6e/v7x MXU is 2x256^2)."""
    return 128 if N <= 128 else _round_up(N, 256)


def _ensure_two_parallel_blocks(tm: int, Mp: int, tn: int, Np: int):
    """v7x shards 'parallel' grid axes across its 2 TensorCores: avoid (1,1,K) grids."""
    if Mp // tm > 1 or Np // tn > 1:
        return tm, tn
    if tn % 256 == 0:
        return tm, tn // 2               # tn//2 still a multiple of 128
    if tm % 32 == 0:
        return tm // 2, tn               # tm//2 still a multiple of 16
    return tm, tn


def _vmem_limit_bytes(tm, tn, tk, x_isz, w_isz, o_isz, extra=0):
    """Double-buffered block footprint + f32 accumulator, with headroom."""
    est = 2 * (tm * tk * x_isz + tk * tn * w_isz + tm * tn * o_isz + tn * 4)
    est += tm * tn * 4 + extra
    est = int(est * 1.5)
    return int(min(max(est, 32 * 1024 * 1024), 64 * 1024 * 1024))


# ------------------------------ Pallas kernels ------------------------------ #

def _matmul_bias_kernel(x_ref, wt_ref, b_ref, o_ref, acc_ref):
    # x:(tm,tk)  wt:(tk,tn) (compute dtype)  b:(1,tn) f32  o:(tm,tn)  acc:(tm,tn) f32
    k = pl.program_id(2)

    @pl.when(k == 0)
    def _init():
        acc_ref[...] = jnp.zeros_like(acc_ref)

    acc_ref[...] += jnp.dot(x_ref[...].astype(wt_ref.dtype), wt_ref[...],
                            preferred_element_type=jnp.float32)

    @pl.when(k == pl.num_programs(2) - 1)
    def _store():
        o_ref[...] = (acc_ref[...] + b_ref[...]).astype(o_ref.dtype)


def _matmul_kernel(x_ref, wt_ref, o_ref, acc_ref):
    # Bias-less variant (used for a_sk = x_rest @ S): no (1,tn) bias DMA, no add.
    k = pl.program_id(2)

    @pl.when(k == 0)
    def _init():
        acc_ref[...] = jnp.zeros_like(acc_ref)

    acc_ref[...] += jnp.dot(x_ref[...].astype(wt_ref.dtype), wt_ref[...],
                            preferred_element_type=jnp.float32)

    @pl.when(k == pl.num_programs(2) - 1)
    def _store():
        o_ref[...] = acc_ref[...].astype(o_ref.dtype)


def _rla_fused_kernel(xe_ref, wte_ref, ask_ref, bsk_ref, b_ref, o_ref, acc_ref):
    # Exact segment tiled over K (grid axis 2); sketch segment (small, lane-dense
    # padded P) accumulated once at k == 0 into the SAME f32 accumulator.
    k = pl.program_id(2)

    @pl.when(k == 0)
    def _init():
        acc_ref[...] = jnp.dot(ask_ref[...].astype(bsk_ref.dtype), bsk_ref[...],
                               preferred_element_type=jnp.float32)

    acc_ref[...] += jnp.dot(xe_ref[...].astype(wte_ref.dtype), wte_ref[...],
                            preferred_element_type=jnp.float32)

    @pl.when(k == pl.num_programs(2) - 1)
    def _store():
        o_ref[...] = (acc_ref[...] + b_ref[...]).astype(o_ref.dtype)


# ------------------------------ Pallas wrappers ----------------------------- #

def pallas_matmul(x2d: jax.Array, wt: jax.Array, bias_row=None, out_dtype=None):
    """out = x2d @ wt (+ bias_row), (tm,tn,tk)-tiled with an f32 VMEM accumulator.

    `wt` must already be lane-padded (wt.shape[1] % 128 == 0); this is done once
    at construction.  Returns (M, wt.shape[1]) in out_dtype.
    """
    M, K = x2d.shape
    Kw, Np = wt.shape
    assert Np % 128 == 0 and Kw >= K
    out_dtype = x2d.dtype if out_dtype is None else out_dtype

    tm, Mp = _tile_m(M)
    tk, Kp = _tile_k(Kw)
    tn = _tile_n(Np)
    tm, tn = _ensure_two_parallel_blocks(tm, Mp, tn, Np)

    if Kp != Kw:                          # rare: weights are pre-padded at init
        wt = jnp.pad(wt, ((0, Kp - Kw), (0, 0)))
    if (Mp, Kp) != (M, K):
        x2d = jnp.pad(x2d, ((0, Mp - M), (0, Kp - K)))

    grid = (Mp // tm, Np // tn, Kp // tk)
    x_spec = pl.BlockSpec((tm, tk), lambda i, j, k: (i, k))
    # TODO(synk): if profiling shows exposed weight DMA on skinny-M calls, add
    # pipeline_mode=pl.Buffered(3) to the weight BlockSpec (re-check v7x VMEM).
    w_spec = pl.BlockSpec((tk, tn), lambda i, j, k: (k, j))
    o_spec = pl.BlockSpec((tm, tn), lambda i, j, k: (i, j))
    params = pltpu.CompilerParams(
        dimension_semantics=("parallel", "parallel", "arbitrary"),
        vmem_limit_bytes=_vmem_limit_bytes(
            tm, tn, tk, x2d.dtype.itemsize, wt.dtype.itemsize,
            np.dtype(out_dtype).itemsize))

    if bias_row is not None:
        out = pl.pallas_call(
            _matmul_bias_kernel,
            out_shape=jax.ShapeDtypeStruct((Mp, Np), out_dtype),
            grid_spec=pltpu.PrefetchScalarGridSpec(
                num_scalar_prefetch=0, grid=grid,
                in_specs=[x_spec, w_spec,
                          pl.BlockSpec((1, tn), lambda i, j, k: (0, j))],
                out_specs=o_spec,
                scratch_shapes=[pltpu.VMEM((tm, tn), jnp.float32)]),
            compiler_params=params,
        )(x2d, wt, bias_row)
    else:
        out = pl.pallas_call(
            _matmul_kernel,
            out_shape=jax.ShapeDtypeStruct((Mp, Np), out_dtype),
            grid_spec=pltpu.PrefetchScalarGridSpec(
                num_scalar_prefetch=0, grid=grid,
                in_specs=[x_spec, w_spec],
                out_specs=o_spec,
                scratch_shapes=[pltpu.VMEM((tm, tn), jnp.float32)]),
            compiler_params=params,
        )(x2d, wt)

    return out[:M] if Mp != M else out


def pallas_rla_fused(x_exact: jax.Array, wt_exact: jax.Array,
                     a_sk: jax.Array, b_sk: jax.Array,
                     bias_row: jax.Array, out_dtype) -> jax.Array:
    """y = x_exact @ wt_exact + a_sk @ b_sk + bias, accumulated in one pass."""
    M, S = x_exact.shape
    Sw, Np = wt_exact.shape
    Ma, Pp = a_sk.shape
    Pb, Nb = b_sk.shape
    assert Ma == M and Pb == Pp and Nb == Np and Np % 128 == 0 and Sw >= S

    tm, Mp = _tile_m(M)
    tk, Sp = _tile_k(Sw)
    tn = _tile_n(Np)
    tm, tn = _ensure_two_parallel_blocks(tm, Mp, tn, Np)

    if Sp != Sw:
        wt_exact = jnp.pad(wt_exact, ((0, Sp - Sw), (0, 0)))
    if (Mp, Sp) != (M, S):
        x_exact = jnp.pad(x_exact, ((0, Mp - M), (0, Sp - S)))
    if Mp != M:
        a_sk = jnp.pad(a_sk, ((0, Mp - M), (0, 0)))

    extra = 2 * (tm * Pp * a_sk.dtype.itemsize + Pp * tn * b_sk.dtype.itemsize)
    params = pltpu.CompilerParams(
        dimension_semantics=("parallel", "parallel", "arbitrary"),
        vmem_limit_bytes=_vmem_limit_bytes(
            tm, tn, tk, x_exact.dtype.itemsize, wt_exact.dtype.itemsize,
            np.dtype(out_dtype).itemsize, extra=extra))

    out = pl.pallas_call(
        _rla_fused_kernel,
        out_shape=jax.ShapeDtypeStruct((Mp, Np), out_dtype),
        grid_spec=pltpu.PrefetchScalarGridSpec(
            num_scalar_prefetch=0,
            grid=(Mp // tm, Np // tn, Sp // tk),
            in_specs=[
                pl.BlockSpec((tm, tk), lambda i, j, k: (i, k)),
                pl.BlockSpec((tk, tn), lambda i, j, k: (k, j)),
                pl.BlockSpec((tm, Pp), lambda i, j, k: (i, 0)),
                pl.BlockSpec((Pp, tn), lambda i, j, k: (0, j)),
                pl.BlockSpec((1, tn), lambda i, j, k: (0, j)),
            ],
            out_specs=pl.BlockSpec((tm, tn), lambda i, j, k: (i, j)),
            scratch_shapes=[pltpu.VMEM((tm, tn), jnp.float32)]),
        compiler_params=params,
    )(x_exact, wt_exact, a_sk, b_sk, bias_row)

    return out[:M] if Mp != M else out


# ----------------------------- RLALinear module ----------------------------- #

class RLALinearPallas:
    """JAX/Pallas port of RLALinear.  Parameters initialized like nn.Linear."""

    def __init__(self, in_features: int, out_features: int, bias: bool = True,
                 sample_exact_dim: int = 0, projection_dim: int = 0,
                 projection_mode: str = "rademacher",
                 deterministic: bool = False,
                 key: jax.Array = None, dtype=jnp.float32,
                 compute_dtype=jnp.bfloat16):
        if key is None:
            key = jax.random.PRNGKey(0)
        if not deterministic:
            if sample_exact_dim < 0 or sample_exact_dim > in_features:
                raise ValueError("sample_exact_dim out of range")
            if projection_dim < 0:
                raise ValueError("projection_dim must be non-negative.")

        self.in_features = in_features
        self.out_features = out_features
        self.sample_exact_dim = sample_exact_dim
        self.projection_dim = projection_dim
        self.projection_mode = projection_mode
        self.deterministic = deterministic
        self.dtype = dtype
        self.compute_dtype = compute_dtype

        kw, kb, kp = jax.random.split(key, 3)
        # kaiming_uniform_(a=sqrt(5)) on (out, in) => U(-1/sqrt(fan_in), 1/sqrt(fan_in))
        bound = 1.0 / math.sqrt(in_features) if in_features > 0 else 0.0
        self.weight = jax.random.uniform(
            kw, (out_features, in_features), dtype, -bound, bound)
        self.bias = (jax.random.uniform(kb, (out_features,), dtype, -bound, bound)
                     if bias else None)
        self._proj_key = kp

        # One-time weight preprocessing: transpose to (K, N), cast to the MXU
        # compute dtype (bf16 by default), pad N lane-dense and K to its tile.
        Np = _pad_n(out_features)
        self._Np = Np
        wt = jnp.transpose(self.weight).astype(compute_dtype)        # (K, N)
        if Np != out_features:
            wt = jnp.pad(wt, ((0, 0), (0, Np - out_features)))       # (K, Np)
        Kp_full = _tile_k(in_features)[1]
        self._wt_full = (jnp.pad(wt, ((0, Kp_full - in_features), (0, 0)))
                         if Kp_full != in_features else wt)          # (Kp, Np)

        b = self.bias if self.bias is not None else jnp.zeros((out_features,), dtype)
        self._bias_row = jnp.pad(b.astype(jnp.float32),
                                 (0, Np - out_features)).reshape(1, Np)

        s = sample_exact_dim
        r = in_features - s
        self._wt_exact = None
        self._wt_rest = None
        if (not deterministic) and s > 0:
            Sp = _tile_k(s)[1]
            wte = wt[:s, :]
            self._wt_exact = (jnp.pad(wte, ((0, Sp - s), (0, 0)))
                              if Sp != s else wte)                   # (Sp, Np)
        if (not deterministic) and r > 0 and projection_dim > 0:
            self._wt_rest = wt[s:, :]                                # (r, Np)

    # ------------------------------------------------------------------ #
    def _make_sketch(self, rest_dim: int, key: jax.Array) -> jax.Array:
        """Random sketch S (r, Pp), scaled 1/sqrt(p), zero-padded to lane width."""
        p = self.projection_dim
        Pp = _round_up(p, 128)
        if self.projection_mode == "gaussian":
            S = jax.random.normal(key, (rest_dim, p), jnp.float32)
        else:  # 'rademacher'
            S = jax.random.rademacher(key, (rest_dim, p)).astype(jnp.float32)
        S = (S / jnp.sqrt(jnp.float32(p))).astype(self.compute_dtype)
        if Pp != p:
            S = jnp.pad(S, ((0, 0), (0, Pp - p)))      # zero cols: no effect
        return S

    # ------------------------------------------------------------------ #
    def __call__(self, x: jax.Array, key: jax.Array = None) -> jax.Array:
        lead = x.shape[:-1]
        N, Np = self.out_features, self._Np
        x2 = x.reshape(-1, self.in_features).astype(self.dtype)
        M = x2.shape[0]

        exact_only = (self.sample_exact_dim == self.in_features
                      and self.projection_dim == 0)
        if self.deterministic or exact_only:
            y2 = pallas_matmul(x2, self._wt_full, bias_row=self._bias_row,
                               out_dtype=self.dtype)
            return y2[:, :N].reshape(*lead, N)

        # ---- randomized: exact first-s dims + random sketch on the rest ----
        s = self.sample_exact_dim
        r = self.in_features - s
        p = self.projection_dim
        if key is None:
            # Fresh sketch per call (matches per-call sampling of the reference).
            self._proj_key, key = jax.random.split(self._proj_key)

        if r > 0 and p > 0:
            S_pad = self._make_sketch(r, key)                        # (r, Pp) bf16
            # (Pp, Np) weight-side sketch, contracting over r WITHOUT materializing S.T.
            b_sk = jax.lax.dot_general(
                S_pad, self._wt_rest, (((0,), (0,)), ((), ())),
                preferred_element_type=jnp.float32).astype(self.compute_dtype)
            a_sk = pallas_matmul(x2[:, s:], S_pad, bias_row=None,
                                 out_dtype=self.compute_dtype)       # (M, Pp) bf16
            if s > 0:
                y2 = pallas_rla_fused(x2[:, :s], self._wt_exact,
                                      a_sk, b_sk, self._bias_row,
                                      out_dtype=self.dtype)
            else:
                y2 = pallas_matmul(a_sk, b_sk, bias_row=self._bias_row,
                                   out_dtype=self.dtype)
        elif s > 0:
            # TODO(synk): projection_dim == 0 with s < in_features drops the
            # trailing columns (matches the previous implementation's behaviour).
            y2 = pallas_matmul(x2[:, :s], self._wt_exact, bias_row=self._bias_row,
                               out_dtype=self.dtype)
        else:
            y2 = jnp.broadcast_to(self._bias_row.astype(self.dtype), (M, Np))

        return y2[:, :N].reshape(*lead, N)


# ----------------------------------- demo ----------------------------------- #

if __name__ == "__main__":
    key = jax.random.PRNGKey(0)
    k_in, k_mod, k_sketch = jax.random.split(key, 3)

    batch, seq, in_features, out_features = 2, 8, 32, 48
    x = jax.random.normal(k_in, (batch, seq, in_features), jnp.float32)

    # 1) Deterministic path, f32 compute: exact check against F.linear reference.
    layer_f32 = RLALinearPallas(in_features, out_features, bias=True,
                                deterministic=True, key=k_mod,
                                compute_dtype=jnp.float32)
    y_f32 = jax.block_until_ready(layer_f32(x))
    y_ref = x @ layer_f32.weight.T + layer_f32.bias
    assert y_f32.shape == (batch, seq, out_features)
    assert jnp.allclose(y_f32, y_ref, atol=1e-5, rtol=1e-5)

    # 2) Deterministic path, default bf16 MXU operands (f32 accumulation).
    layer_det = RLALinearPallas(in_features, out_features, bias=True,
                                deterministic=True, key=k_mod)
    y_det = jax.block_until_ready(layer_det(x))
    assert y_det.shape == (batch, seq, out_features)
    assert jnp.allclose(y_det, y_ref, atol=5e-2, rtol=5e-2)

    # 3) Randomized path (leading-s exact + rademacher sketch), fused kernel.
    s, p = 8, 16
    layer_rnd = RLALinearPallas(in_features, out_features, bias=True,
                                sample_exact_dim=s, projection_dim=p,
                                projection_mode="rademacher",
                                deterministic=False, key=k_mod)
    y_rnd = jax.block_until_ready(layer_rnd(x, key=k_sketch))
    assert y_rnd.shape == (batch, seq, out_features)
    assert bool(jnp.all(jnp.isfinite(y_rnd)))

    # Same-sketch pure-JAX reference (same key => same S values); tolerance
    # accounts for bf16 MXU operands (accumulation stays f32).
    S_ref = (jax.random.rademacher(k_sketch, (in_features - s, p)).astype(jnp.float32)
             / jnp.sqrt(jnp.float32(p)))
    x2 = x.reshape(-1, in_features)
    W = layer_rnd.weight
    y_rnd_ref = (x2[:, :s] @ W.T[:s]
                 + (x2[:, s:] @ S_ref) @ (S_ref.T @ W.T[s:])
                 + layer_rnd.bias).reshape(batch, seq, out_features)
    assert jnp.allclose(y_rnd, y_rnd_ref, atol=1e-1, rtol=1e-1), (
        float(jnp.max(jnp.abs(y_rnd - y_rnd_ref))))

    print("KERNEL_OK")
</pallas_src>

<mosaic_0001>
module attributes {stable_mosaic.version = 11 : i64} {
  func.func @_matmul_bias_kernel(%arg0: i32, %arg1: i32, %arg2: i32, %arg3: memref<16x32xf32, #tpu.memory_space<vmem>>, %arg4: memref<32x128xf32, #tpu.memory_space<vmem>>, %arg5: memref<1x128xf32, #tpu.memory_space<vmem>>, %arg6: memref<16x128xf32, #tpu.memory_space<vmem>>, %arg7: memref<16x128xf32, #tpu.memory_space<vmem>>) attributes {dimension_semantics = [#tpu.dimension_semantics<parallel>, #tpu.dimension_semantics<parallel>, #tpu.dimension_semantics<arbitrary>], iteration_bounds = array<i64: 1, 1, 1>, scalar_prefetch = 0 : i64, scratch_operands = 1 : i64, tpu.core_type = #tpu.core_type<tc>, window_params = [{transform_indices = @transform_0, window_bounds = array<i64: 16, 32>}, {transform_indices = @transform_1, window_bounds = array<i64: 32, 128>}, {transform_indices = @transform_2, window_bounds = array<i64: 1, 128>}, {transform_indices = @transform_3, window_bounds = array<i64: 16, 128>}]} {
    %c0_i32 = arith.constant 0 : i32
    %0 = arith.cmpi eq, %arg2, %c0_i32 : i32
    %1 = arith.extui %0 : i1 to i32
    %c0_i32_0 = arith.constant 0 : i32
    %2 = arith.cmpi ne, %1, %c0_i32_0 : i32
    scf.if %2 {
      %cst_10 = arith.constant 0.000000e+00 : f32
      %12 = vector.broadcast %cst_10 : f32 to vector<16x128xf32>
      %c0_11 = arith.constant 0 : index
      %c0_12 = arith.constant 0 : index
      %13 = vector.load %arg7[%c0_11, %c0_12] : memref<16x128xf32, #tpu.memory_space<vmem>>, vector<16x128xf32>
      tpu.vector_store %arg7[%c0_11, %c0_12], %12 {strides = array<i32>} : memref<16x128xf32, #tpu.memory_space<vmem>>, vector<16x128xf32>,
    } else {
    }
    %c0 = arith.constant 0 : index
    %c0_1 = arith.constant 0 : index
    %3 = vector.load %arg7[%c0, %c0_1] : memref<16x128xf32, #tpu.memory_space<vmem>>, vector<16x128xf32>
    %c0_2 = arith.constant 0 : index
    %c0_3 = arith.constant 0 : index
    %4 = vector.load %arg3[%c0_2, %c0_3] : memref<16x32xf32, #tpu.memory_space<vmem>>, vector<16x32xf32>
    %c0_4 = arith.constant 0 : index
    %c0_5 = arith.constant 0 : index
    %5 = vector.load %arg4[%c0_4, %c0_5] : memref<32x128xf32, #tpu.memory_space<vmem>>, vector<32x128xf32>
    %cst = arith.constant dense<0.000000e+00> : vector<16x128xf32>
    %6 = tpu.matmul %4, %5, %cst {dimension_numbers = #tpu.dot_dimension_numbers<[1], [0], [0], [1], [0, 0, 1, 1], [], []>} : vector<16x32xf32>, vector<32x128xf32>, vector<16x128xf32> -> vector<16x128xf32>
    %7 = arith.addf %3, %6 : vector<16x128xf32>
    %c0_6 = arith.constant 0 : index
    %c0_7 = arith.constant 0 : index
    %8 = vector.load %arg7[%c0_6, %c0_7] : memref<16x128xf32, #tpu.memory_space<vmem>>, vector<16x128xf32>
    tpu.vector_store %arg7[%c0_6, %c0_7], %7 {strides = array<i32>} : memref<16x128xf32, #tpu.memory_space<vmem>>, vector<16x128xf32>,
    %c0_i32_8 = arith.constant 0 : i32
    %9 = arith.cmpi eq, %arg2, %c0_i32_8 : i32
    %10 = arith.extui %9 : i1 to i32
    %c0_i32_9 = arith.constant 0 : i32
    %11 = arith.cmpi ne, %10, %c0_i32_9 : i32
    scf.if %11 {
      %c0_10 = arith.constant 0 : index
      %c0_11 = arith.constant 0 : index
      %12 = vector.load %arg7[%c0_10, %c0_11] : memref<16x128xf32, #tpu.memory_space<vmem>>, vector<16x128xf32>
      %c0_12 = arith.constant 0 : index
      %c0_13 = arith.constant 0 : index
      %13 = vector.load %arg5[%c0_12, %c0_13] : memref<1x128xf32, #tpu.memory_space<vmem>>, vector<1x128xf32>
      %14 = vector.broadcast %13 : vector<1x128xf32> to vector<16x128xf32>
      %15 = arith.addf %12, %14 : vector<16x128xf32>
      %c0_14 = arith.constant 0 : index
      %c0_15 = arith.constant 0 : index
      %16 = vector.load %arg6[%c0_14, %c0_15] : memref<16x128xf32, #tpu.memory_space<vmem>>, vector<16x128xf32>
      tpu.vector_store %arg6[%c0_14, %c0_15], %15 {strides = array<i32>} : memref<16x128xf32, #tpu.memory_space<vmem>>, vector<16x128xf32>,
    } else {
    }
    return
  }
  func.func @transform_0(%arg0: i32, %arg1: i32, %arg2: i32) -> (i32, i32) {
    %c0_i32 = arith.constant 0 : i32
    return %arg0, %arg2 : i32, i32
  }
  func.func @transform_1(%arg0: i32, %arg1: i32, %arg2: i32) -> (i32, i32) {
    %c0_i32 = arith.constant 0 : i32
    return %arg2, %arg1 : i32, i32
  }
  func.func @transform_2(%arg0: i32, %arg1: i32, %arg2: i32) -> (i32, i32) {
    %c0_i32 = arith.constant 0 : i32
    %c0_i32_0 = arith.constant 0 : i32
    return %c0_i32, %arg1 : i32, i32
  }
  func.func @transform_3(%arg0: i32, %arg1: i32, %arg2: i32) -> (i32, i32) {
    %c0_i32 = arith.constant 0 : i32
    return %arg0, %arg1 : i32, i32
  }
}

</mosaic_0001>

<llo_original>
// kernel: tpu_custom_call.1
$region0: #{tpu_custom_call.1}
  #allocation0 [shape = 'u32[]', space=smem, size = 0x4, offset = 0x4, fixed_abs, tag = 'smem constant byte address 0x4 - core index']
  #allocation1 [shape = 'u32[144,128]{1,0:T(1,128)}', space=vmem, size = 0x12000, scoped, tag = 'internal scratch']
  #allocation2 [shape = 'f32[16,128]{1,0:T(8,128)}', space=vmem, size = 0x2000, scoped, tag = 'scratch operand']
  %s0 = inlined_call_operand.hbm [shape: f32[16,32], index: 0, kind: input, shape index: {}]
  %s1 = inlined_call_operand.hbm [shape: f32[32,128], index: 1, kind: input, shape index: {}]
  %s2 = inlined_call_operand.vmem [shape: f32[1,128], index: 2, kind: input, shape index: {}]
  %s3 = inlined_call_operand.hbm [shape: f32[16,128], index: 3, kind: output, shape index: {}]
  %s4 = sld [smem:[#allocation0]]
  $region38: #{tpu_custom_call.1} parent=0
    _
  %s6 = ssub.s32 1, %s4
  %s7 = scalar_select 0, %s6, %s4
  $region1: #{tpu_custom_call.1} parent=0
    #allocation3 [shape = 'u8[8192]{0}', space=vmem, size = 0x2000, scoped, tag = 'input window, operand 0, single buffered']
    #allocation4 [shape = 's32[1]{0}', space=sflag, size = 0x4, scoped, tag = 'scoped memory for tpu_custom_call.1']
    #allocation5 [shape = 's32[1]{0}', space=sflag, size = 0x4, scoped, tag = 'scoped memory for tpu_custom_call.1']
    #allocation6 [shape = 'u8[16384]{0}', space=vmem, size = 0x4000, scoped, tag = 'input window, operand 1, single buffered']
    #allocation7 [shape = 's32[1]{0}', space=sflag, size = 0x4, scoped, tag = 'scoped memory for tpu_custom_call.1']
    #allocation8 [shape = 'u8[8192]{0}', space=vmem, size = 0x2000, scoped, tag = 'output window, operand 0, single buffered']
    %8 = vsyncpa [#allocation4], 0
    %9 = vsyncpa [#allocation7], 0
    %10 = vsyncpa [#allocation5], 0
    // Predicated region
    $region2: #{tpu_custom_call.1} parent=1 // pred_check
      _
    $region3: #{tpu_custom_call.1} parent=1 // pred_check_branch
      %12 = sbr.rel (0) target = $region5
    $region4: #{tpu_custom_call.1} parent=1 // pred_region
      %s14 = ssub.s32 256, 256
      %15 = vsyncadd [#allocation4], %s14
      %s16 = sshll.u32 [#allocation3], 4
      %s17 = int_to_ptr.vmem [resolvable:$true] %s16
      %22 = dma.hbm_to_vmem [thread:$0]  %s0, 256, %s17, [#allocation4], 128, 128, 8
    $region5: #{tpu_custom_call.1} parent=1 // pred_fallthru
      _
    // Predicated region
    $region6: #{tpu_custom_call.1} parent=1 // pred_check
      _
    $region7: #{tpu_custom_call.1} parent=1 // pred_check_branch
      %24 = sbr.rel (0) target = $region9
    $region8: #{tpu_custom_call.1} parent=1 // pred_region
      %s26 = ssub.s32 512, 512
      %27 = vsyncadd [#allocation7], %s26
      %s28 = sshll.u32 [#allocation6], 4
      %s29 = int_to_ptr.vmem [resolvable:$true] %s28
      %34 = dma.hbm_to_vmem [thread:$0]  %s1, 512, %s29, [#allocation7], 128, 128, 8
    $region9: #{tpu_custom_call.1} parent=1 // pred_fallthru
      _
    // Predicated region
    $region10: #{tpu_custom_call.1} parent=1 // pred_check
      _
    $region11: #{tpu_custom_call.1} parent=1 // pred_check_branch
      %36 = sbr.rel (0) target = $region13
    $region12: #{tpu_custom_call.1} parent=1 // pred_region
      _
    $region13: #{tpu_custom_call.1} parent=1 // pred_fallthru
      _
    // Predicated region
    $region14: #{tpu_custom_call.1} parent=1 // pred_check
      _
    $region15: #{tpu_custom_call.1} parent=1 // pred_check_branch
      %38 = sbr.rel (0) target = $region17
    $region16: #{tpu_custom_call.1} parent=1 // pred_region
      %39 = dma.done [#allocation4], 256
    $region17: #{tpu_custom_call.1} parent=1 // pred_fallthru
      _
    // Predicated region
    $region18: #{tpu_custom_call.1} parent=1 // pred_check
      _
    $region19: #{tpu_custom_call.1} parent=1 // pred_check_branch
      %41 = sbr.rel (0) target = $region21
    $region20: #{tpu_custom_call.1} parent=1 // pred_region
      %42 = dma.done [#allocation7], 512
    $region21: #{tpu_custom_call.1} parent=1 // pred_fallthru
      _
    %p43 = scmp.eq.s32.totalorder 0, 0
    // Predicated region
    $region22: #{tpu_custom_call.1} parent=1 // pred_check
      %p44 = pneg %p43
    $region23: #{tpu_custom_call.1} parent=1 // pred_check_branch
      %46 = sbr.rel (%p44) target = $region25
    $region24: #{tpu_custom_call.1} parent=1 // pred_region
      %47 = vst [vmem:[#allocation2] sm:$0xff] 0.0
      %48 = vst [vmem:[#allocation2 + $0x8] sm:$0xff] 0.0
    $region25: #{tpu_custom_call.1} parent=1 // pred_fallthru
      _
    %v49 = vld [vmem:[#allocation2] sm:$0xff]
    %v50 = vld [vmem:[#allocation2 + $0x8] sm:$0xff]
    %v51 = vld [vmem:[#allocation3] sm:$0xff]
    %v52 = vld [vmem:[#allocation3 + $0x8] sm:$0xff]
    %v53 = vld [vmem:[#allocation6] sm:$0xff]
    %v54 = vld [vmem:[#allocation6 + $0x8] sm:$0xff]
    %v55 = vld [vmem:[#allocation6 + $0x10] sm:$0xff]
    %v56 = vld [vmem:[#allocation6 + $0x18] sm:$0xff]
    %vm57 = vcmask 261120
    %v59 = vsel %vm57, %v51, 0
    %v62 = vsel %vm57, %v52, 0
    %64 = vmatprep.subr.mxu0 0.0
    %65 = vmatpush1.msra.mxu0 %v53
    %66 = vmatprep.subr.mxu0 0.0
    %67 = vmatpush1.msra.mxu0 %v54
    %68 = vmatprep.subr.mxu0 0.0
    %69 = vmatpush1.msra.mxu0 %v55
    %70 = vmatprep.subr.mxu0 0.0
    %71 = vmatpush1.msra.mxu0 %v56
    %72 = vmatprep.subr.mxu0 0.0
    %73 = vmatpush1.msra.mxu0 0.0
    %74 = vmatprep.subr.mxu0 0.0
    %75 = vmatpush1.msra.mxu0 0.0
    %76 = vmatprep.subr.mxu0 0.0
    %77 = vmatpush1.msra.mxu0 0.0
    %78 = vmatprep.subr.mxu0 0.0
    %79 = vmatpush1.msra.mxu0 0.0
    %80 = vmatprep.subr.mxu0 0.0
    %81 = vmatpush1.msra.mxu0 0.0
    %82 = vmatprep.subr.mxu0 0.0
    %83 = vmatpush1.msra.mxu0 0.0
    %84 = vmatprep.subr.mxu0 0.0
    %85 = vmatpush1.msra.mxu0 0.0
    %86 = vmatprep.subr.mxu0 0.0
    %87 = vmatpush1.msra.mxu0 0.0
    %88 = vmatprep.subr.mxu0 0.0
    %89 = vmatpush1.msra.mxu0 0.0
    %90 = vmatprep.subr.mxu0 0.0
    %91 = vmatpush1.msra.mxu0 0.0
    %92 = vmatprep.subr.mxu0 0.0
    %93 = vmatpush1.msra.mxu0 0.0
    %94 = vmatprep.subr.mxu0 0.0
    %95 = vmatpush1.msra.mxu0 0.0
    %96 = vmatprep.subr.mxu0 0.0
    %97 = vmatpush1.msra.mxu0 0.0
    %98 = vmatprep.subr.mxu0 0.0
    %99 = vmatpush1.msra.mxu0 0.0
    %100 = vmatprep.subr.mxu0 0.0
    %101 = vmatpush1.msra.mxu0 0.0
    %102 = vmatprep.subr.mxu0 0.0
    %103 = vmatpush1.msra.mxu0 0.0
    %104 = vmatprep.subr.mxu0 0.0
    %105 = vmatpush1.msra.mxu0 0.0
    %106 = vmatprep.subr.mxu0 0.0
    %107 = vmatpush1.msra.mxu0 0.0
    %108 = vmatprep.subr.mxu0 0.0
    %109 = vmatpush1.msra.mxu0 0.0
    %110 = vmatprep.subr.mxu0 0.0
    %111 = vmatpush1.msra.mxu0 0.0
    %112 = vmatprep.subr.mxu0 0.0
    %113 = vmatpush1.msra.mxu0 0.0
    %114 = vmatprep.subr.mxu0 0.0
    %115 = vmatpush1.msra.mxu0 0.0
    %116 = vmatprep.subr.mxu0 0.0
    %117 = vmatpush1.msra.mxu0 0.0
    %118 = vmatprep.subr.mxu0 0.0
    %119 = vmatpush1.msra.mxu0 0.0
    %120 = vmatprep.subr.mxu0 0.0
    %121 = vmatpush1.msra.mxu0 0.0
    %122 = vmatprep.subr.mxu0 0.0
    %123 = vmatpush1.msra.mxu0 0.0
    %124 = vmatprep.subr.mxu0 0.0
    %125 = vmatpush1.msra.mxu0 0.0
    %126 = vmatprep.subr.mxu0 0.0
    %127 = vmatpush1.msra.mxu0 0.0
    %128 = vmatprep.mubr.f32.mxu0 0.0
    %129 = vmatmul.mubr.f32.gmra.mrb[0].mxu0 %v59
    %v130 = vpop.f32.mrb[0].mxu0
    %v131 = vadd.f32 0.0, %v130
    %v132 = vpop.f32.mrb[0].mxu0
    %133 = vmatprep.mubr.f32.mxu0 0.0
    %134 = vmatmul.mubr.f32.gmra.mrb[0].mxu0 %v62
    %v135 = vpop.f32.mrb[0].mxu0
    %v136 = vadd.f32 0.0, %v135
    %v137 = vpop.f32.mrb[0].mxu0
    %138 = vdwg.mxu0
    %v139 = vadd.f32 %v49, %v131
    %v140 = vadd.f32 %v50, %v136
    %141 = vst [vmem:[#allocation2] sm:$0xff] %v139
    %142 = vst [vmem:[#allocation2 + $0x8] sm:$0xff] %v140
    // Predicated region
    $region26: #{tpu_custom_call.1} parent=1 // pred_check
      %p143 = pneg %p43
    $region27: #{tpu_custom_call.1} parent=1 // pred_check_branch
      %145 = sbr.rel (%p143) target = $region29
    $region28: #{tpu_custom_call.1} parent=1 // pred_region
      %v146 = vld [vmem:[#allocation2] sm:$0xff]
      %v147 = vld [vmem:[#allocation2 + $0x8] sm:$0xff]
      %v148 = vld [vmem:[%s2] sm:$0x1]
      %v150 = vlaneseq
      %v151 = vshrl.u32 %v150, 7
      %v152 = vsub.s32 0, %v151
      %v153 = vrot.slane %v148, %v152
      %v155 = vadd.f32 %v146, %v153
      %v156 = vadd.f32 %v147, %v153
      %157 = vst [vmem:[#allocation8] sm:$0xff] %v155
      %158 = vst [vmem:[#allocation8 + $0x8] sm:$0xff] %v156
    $region29: #{tpu_custom_call.1} parent=1 // pred_fallthru
      _
    // Predicated region
    $region30: #{tpu_custom_call.1} parent=1 // pred_check
      _
    $region31: #{tpu_custom_call.1} parent=1 // pred_check_branch
      %160 = sbr.rel (0) target = $region33
    $region32: #{tpu_custom_call.1} parent=1 // pred_region
      %s162 = ssub.s32 256, 256
      %163 = vsyncadd [#allocation5], %s162
      %s164 = sshll.u32 [#allocation8], 4
      %s165 = int_to_ptr.vmem [resolvable:$true] %s164
      %170 = dma.vmem_to_hbm [thread:$0]  %s165, 256, %s3, [#allocation5], 128, 128, 8
    $region33: #{tpu_custom_call.1} parent=1 // pred_fallthru
      _
    // Predicated region
    $region34: #{tpu_custom_call.1} parent=1 // pred_check
      _
    $region35: #{tpu_custom_call.1} parent=1 // pred_check_branch
      %172 = sbr.rel (0) target = $region37
    $region36: #{tpu_custom_call.1} parent=1 // pred_region
      %173 = dma.done [#allocation5], 256
    $region37: #{tpu_custom_call.1} parent=1 // pred_fallthru
      _
    %174 = vsyncpa [#allocation4], 1
    %175 = vsyncpa [#allocation7], 1
    %176 = vsyncpa [#allocation5], 1

</llo_original>
